<compile_context>
chip_gen: v7x
topology: tpu7x:2x2x1
jax: 0.10.0
libtpu: 0.0.40
codegen_flags: <defaults>
</compile_context>

<pallas_src>
import functools

import jax
import jax.numpy as jnp
from jax.experimental import pallas as pl
from jax.experimental.pallas import tpu as pltpu


def _round_up(x, k):
    return (x + k - 1) // k * k


# ---------------------------------------------------------------------------
# Pass A: scatter-add  h[dst[e]] += m[e]   (h is an output-resident accumulator
# over the "arbitrary" E axis; padded edges have dst=0 and all-zero m rows, so
# they are no-ops.)
# ---------------------------------------------------------------------------
def scatter_kernel(dst_ref, m_ref, h_ref, *, tile_e):
    @pl.when(pl.program_id(0) == 0)
    def _():
        h_ref[...] = jnp.zeros_like(h_ref)

    e0 = pl.program_id(0) * tile_e

    def body(j, carry):
        d = dst_ref[e0 + j]                                   # SMEM scalar read
        h_ref[pl.ds(d, 1), :] = h_ref[pl.ds(d, 1), :] + m_ref[pl.ds(j, 1), :]
        return carry

    jax.lax.fori_loop(0, tile_e, body, 0)


# ---------------------------------------------------------------------------
# Pass B: gather h[src[e]], z = h_src @ Wh + m @ Wm, per-tile BN partial sums.
# No cross-tile dependency -> "parallel" grid axis (v7x megacore).
# ---------------------------------------------------------------------------
def gather_linear_kernel(src_ref, h_ref, m_ref, wh_ref, wm_ref,
                         z_ref, stats_ref, hsrc_ref,
                         *, tile_e, num_real_edges):
    e0 = pl.program_id(0) * tile_e

    def body(j, carry):
        s = src_ref[e0 + j]                                   # SMEM scalar read
        hsrc_ref[pl.ds(j, 1), :] = h_ref[pl.ds(s, 1), :]      # VMEM row gather
        return carry

    jax.lax.fori_loop(0, tile_e, body, 0)

    # Linear with the concat split algebraically:
    #   cat(h_src, m) @ W == h_src @ W[:in] + m @ W[in:]
    # (bias omitted: exactly cancelled by BN's batch-mean subtraction)
    z = (jnp.dot(hsrc_ref[...], wh_ref[...], preferred_element_type=jnp.float32)
         + jnp.dot(m_ref[...], wm_ref[...], preferred_element_type=jnp.float32))

    # Zero padded edge rows (their gathered h_src is arbitrary) so they do not
    # pollute the BN statistics.
    row = jax.lax.broadcasted_iota(jnp.int32, (tile_e, 1), 0) + e0
    z = z * (row < num_real_edges).astype(jnp.float32)

    z_ref[...] = z
    s1 = jnp.sum(z, axis=0, keepdims=True)                    # [1, OUT_P]
    s2 = jnp.sum(z * z, axis=0, keepdims=True)                # [1, OUT_P]
    stats_ref[...] = jnp.concatenate([s1, s2], axis=0).reshape(stats_ref.shape)


# ---------------------------------------------------------------------------
# Pass C: reduce per-tile stats, normalize (training-mode BN), affine, ReLU.
# ---------------------------------------------------------------------------
def bn_relu_kernel(z_ref, stats_ref, gamma_ref, beta_ref, out_ref,
                   *, num_real_edges, eps):
    stats = jnp.sum(stats_ref[...], axis=0)                   # [2, OUT_P]
    inv_e = 1.0 / num_real_edges
    mean = stats[0:1, :] * inv_e
    # NOTE: E[z^2]-E[z]^2 is cancellation-prone for very large E / large |mean|;
    # acceptable at these scales.  TODO(synk): Welford-style tile combine.
    var = jnp.maximum(stats[1:2, :] * inv_e - mean * mean, 0.0)
    inv = jax.lax.rsqrt(var + eps)
    zn = (z_ref[...] - mean) * (inv * gamma_ref[...]) + beta_ref[...]
    out_ref[...] = jnp.maximum(zn, 0.0)


def gnn_edges_forward(src, dst, m, w, b, gamma, beta, num_nodes):
    """src, dst: int32 [E]; m: [E, in_feats]; w: [2*in_feats, out_feats]."""
    del b  # mathematically cancelled by BatchNorm's (training) mean subtraction
    E, in_feats = m.shape
    out_feats = w.shape[1]
    N = num_nodes

    # Lane-dense feature widths; MXU-friendly edge tiles; node rows need only
    # sublane (8) alignment now that the dense one-hot operands are gone.
    IN_P = _round_up(in_feats, 128)
    OUT_P = _round_up(out_feats, 128)
    N_p = _round_up(N, 8)
    tile_e = 256 if E >= 256 else _round_up(E, 8)
    E_p = _round_up(E, tile_e)
    n_tiles = E_p // tile_e

    f32 = jnp.float32
    m_p = jnp.pad(m.astype(f32), ((0, E_p - E), (0, IN_P - in_feats)))
    w_h = jnp.pad(w[:in_feats].astype(f32),
                  ((0, IN_P - in_feats), (0, OUT_P - out_feats)))
    w_m = jnp.pad(w[in_feats:].astype(f32),
                  ((0, IN_P - in_feats), (0, OUT_P - out_feats)))
    gamma_p = jnp.pad(gamma.astype(f32), (0, OUT_P - out_feats)).reshape(1, OUT_P)
    beta_p = jnp.pad(beta.astype(f32), (0, OUT_P - out_feats)).reshape(1, OUT_P)
    # Padded edges point at node 0 (always in-bounds) but carry all-zero m rows
    # and are masked out of the BN statistics inside pass B.
    src_p = jnp.pad(src.astype(jnp.int32), (0, E_p - E))
    dst_p = jnp.pad(dst.astype(jnp.int32), (0, E_p - E))

    # TODO(synk): derive tile_e / vmem_limit_bytes from
    # pltpu.get_tpu_info().vmem_capacity_bytes (64 MiB on v7x vs 128 MiB on
    # v5e/v6e); 32 MiB is ample for these tile sizes on all generations.
    VMEM_LIMIT = 32 * 1024 * 1024
    cparams_seq = pltpu.CompilerParams(
        dimension_semantics=("arbitrary",), vmem_limit_bytes=VMEM_LIMIT)
    cparams_par = pltpu.CompilerParams(
        dimension_semantics=("parallel",), vmem_limit_bytes=VMEM_LIMIT)

    # ---- pass A: scatter-add into h ---------------------------------------
    h_p = pl.pallas_call(
        functools.partial(scatter_kernel, tile_e=tile_e),
        out_shape=jax.ShapeDtypeStruct((N_p, IN_P), f32),
        grid_spec=pltpu.PrefetchScalarGridSpec(
            num_scalar_prefetch=1,
            grid=(n_tiles,),
            in_specs=[pl.BlockSpec((tile_e, IN_P), lambda e, dst: (e, 0))],
            out_specs=pl.BlockSpec((N_p, IN_P), lambda e, dst: (0, 0))),
        compiler_params=cparams_seq,
        cost_estimate=pl.CostEstimate(
            flops=E_p * IN_P,
            transcendentals=0,
            bytes_accessed=4 * (E_p * IN_P + N_p * IN_P + E_p)),
    )(dst_p, m_p)

    # ---- pass B: gather + Linear + per-tile BN partial sums ----------------
    z_p, stats_p = pl.pallas_call(
        functools.partial(gather_linear_kernel, tile_e=tile_e,
                          num_real_edges=E),
        out_shape=(jax.ShapeDtypeStruct((E_p, OUT_P), f32),
                   jax.ShapeDtypeStruct((n_tiles, 2, OUT_P), f32)),
        grid_spec=pltpu.PrefetchScalarGridSpec(
            num_scalar_prefetch=1,
            grid=(n_tiles,),
            in_specs=[pl.BlockSpec((N_p, IN_P), lambda e, src: (0, 0)),
                      pl.BlockSpec((tile_e, IN_P), lambda e, src: (e, 0)),
                      pl.BlockSpec((IN_P, OUT_P), lambda e, src: (0, 0)),
                      pl.BlockSpec((IN_P, OUT_P), lambda e, src: (0, 0))],
            out_specs=(pl.BlockSpec((tile_e, OUT_P), lambda e, src: (e, 0)),
                       pl.BlockSpec((1, 2, OUT_P), lambda e, src: (e, 0, 0))),
            scratch_shapes=[pltpu.VMEM((tile_e, IN_P), f32)]),
        compiler_params=cparams_par,
        cost_estimate=pl.CostEstimate(
            flops=4 * E_p * IN_P * OUT_P + 4 * E_p * OUT_P,
            transcendentals=0,
            bytes_accessed=4 * (E_p * IN_P + N_p * IN_P + 2 * IN_P * OUT_P
                                + E_p * OUT_P + n_tiles * 2 * OUT_P + E_p)),
    )(src_p, h_p, m_p, w_h, w_m)

    # ---- pass C: finalize BN, affine, ReLU ---------------------------------
    m_out_p = pl.pallas_call(
        functools.partial(bn_relu_kernel, num_real_edges=E, eps=1e-5),
        out_shape=jax.ShapeDtypeStruct((E_p, OUT_P), f32),
        grid=(n_tiles,),
        in_specs=[pl.BlockSpec((tile_e, OUT_P), lambda e: (e, 0)),
                  pl.BlockSpec((n_tiles, 2, OUT_P), lambda e: (0, 0, 0)),
                  pl.BlockSpec((1, OUT_P), lambda e: (0, 0)),
                  pl.BlockSpec((1, OUT_P), lambda e: (0, 0))],
        out_specs=pl.BlockSpec((tile_e, OUT_P), lambda e: (e, 0)),
        compiler_params=cparams_par,
        cost_estimate=pl.CostEstimate(
            flops=6 * E_p * OUT_P,
            transcendentals=OUT_P,
            bytes_accessed=4 * (2 * E_p * OUT_P + (n_tiles * 2 + 2) * OUT_P)),
    )(z_p, stats_p, gamma_p, beta_p)

    return m_out_p[:E, :out_feats], h_p[:N, :in_feats]


def gnn_edges_reference(src, dst, m, w, b, gamma, beta, num_nodes):
    h = jnp.zeros((num_nodes, m.shape[1]), jnp.float32).at[dst].add(m)
    cat = jnp.concatenate([h[src], m], axis=1)
    z = cat @ w + b
    mean = z.mean(0, keepdims=True)
    var = ((z - mean) ** 2).mean(0, keepdims=True)
    zn = (z - mean) / jnp.sqrt(var + 1e-5) * gamma + beta
    return jnp.maximum(zn, 0.0), h


if __name__ == "__main__":
    key = jax.random.PRNGKey(0)
    N, E = 16, 32            # nodes, edges
    in_feats, out_feats = 32, 32

    k_src, k_dst, k_m, k_w, k_b, k_g, k_be = jax.random.split(key, 7)
    src = jax.random.randint(k_src, (E,), 0, N, dtype=jnp.int32)
    dst = jax.random.randint(k_dst, (E,), 0, N, dtype=jnp.int32)
    m = jax.random.normal(k_m, (E, in_feats), jnp.float32)

    # deterministic "nn.Linear(2*in, out)" style params
    fan_in = 2 * in_feats
    bound = 1.0 / (fan_in ** 0.5)
    w = jax.random.uniform(k_w, (2 * in_feats, out_feats), jnp.float32,
                           -bound, bound)
    b = jax.random.uniform(k_b, (out_feats,), jnp.float32, -bound, bound)
    # BatchNorm1d affine params (perturbed so the affine path is exercised)
    gamma = 1.0 + 0.1 * jax.random.normal(k_g, (out_feats,), jnp.float32)
    beta = 0.1 * jax.random.normal(k_be, (out_feats,), jnp.float32)

    m_out, h_out = gnn_edges_forward(src, dst, m, w, b, gamma, beta, N)
    jax.block_until_ready((m_out, h_out))

    m_ref, h_ref = gnn_edges_reference(src, dst, m, w, b, gamma, beta, N)
    assert jnp.allclose(m_out, m_ref, atol=1e-4, rtol=1e-4)
    assert jnp.allclose(h_out, h_ref, atol=1e-4, rtol=1e-4)

    print("KERNEL_OK")
</pallas_src>

<mosaic_0001>
module attributes {stable_mosaic.version = 11 : i64} {
  func.func @scatter_kernel(%arg0: i32, %arg1: memref<32xi32, #tpu.memory_space<smem>>, %arg2: memref<32x128xf32, #tpu.memory_space<vmem>>, %arg3: memref<16x128xf32, #tpu.memory_space<vmem>>) attributes {dimension_semantics = [#tpu.dimension_semantics<arbitrary>], iteration_bounds = array<i64: 1>, scalar_prefetch = 1 : i64, scratch_operands = 0 : i64, tpu.core_type = #tpu.core_type<tc>, window_params = [{transform_indices = @transform_0, window_bounds = array<i64: 32, 128>}, {pipeline_mode = #tpu.pipeline_mode<synchronous>, transform_indices = @transform_1, window_bounds = array<i64: 16, 128>}]} {
    %c0_i32 = arith.constant 0 : i32
    %0 = arith.cmpi eq, %arg0, %c0_i32 : i32
    %1 = arith.extui %0 : i1 to i32
    %c0_i32_0 = arith.constant 0 : i32
    %2 = arith.cmpi ne, %1, %c0_i32_0 : i32
    scf.if %2 {
      %cst = arith.constant 0.000000e+00 : f32
      %5 = vector.broadcast %cst : f32 to vector<16x128xf32>
      %c0 = arith.constant 0 : index
      %c0_4 = arith.constant 0 : index
      %6 = vector.load %arg3[%c0, %c0_4] : memref<16x128xf32, #tpu.memory_space<vmem>>, vector<16x128xf32>
      tpu.vector_store %arg3[%c0, %c0_4], %5 {strides = array<i32>} : memref<16x128xf32, #tpu.memory_space<vmem>>, vector<16x128xf32>,
    } else {
    }
    %c32_i32 = arith.constant 32 : i32
    %3 = arith.muli %arg0, %c32_i32 : i32
    %c0_i32_1 = arith.constant 0 : i32
    %c32_i32_2 = arith.constant 32 : i32
    %4 = arith.addi %c0_i32_1, %c32_i32_2 : i32
    %c1_i32 = arith.constant 1 : i32
    scf.for %arg4 = %c0_i32_1 to %4 step %c1_i32  : i32 {
      %5 = arith.addi %3, %arg4 : i32
      %6 = arith.index_cast %5 : i32 to index
      %7 = memref.load %arg1[%6] : memref<32xi32, #tpu.memory_space<smem>>
      %8 = arith.index_cast %7 : i32 to index
      %c0 = arith.constant 0 : index
      %9 = vector.load %arg3[%8, %c0] : memref<16x128xf32, #tpu.memory_space<vmem>>, vector<1x128xf32>
      %10 = arith.index_cast %arg4 : i32 to index
      %c0_4 = arith.constant 0 : index
      %11 = vector.load %arg2[%10, %c0_4] : memref<32x128xf32, #tpu.memory_space<vmem>>, vector<1x128xf32>
      %12 = arith.addf %9, %11 : vector<1x128xf32>
      %13 = arith.index_cast %7 : i32 to index
      %c0_5 = arith.constant 0 : index
      %14 = vector.load %arg3[%13, %c0_5] : memref<16x128xf32, #tpu.memory_space<vmem>>, vector<1x128xf32>
      tpu.vector_store %arg3[%13, %c0_5], %12 {strides = array<i32>} : memref<16x128xf32, #tpu.memory_space<vmem>>, vector<1x128xf32>,
    }
    %c32_i32_3 = arith.constant 32 : i32
    return
  }
  func.func @transform_0(%arg0: i32, %arg1: memref<32xi32, #tpu.memory_space<smem>>) -> (i32, i32) {
    %c0_i32 = arith.constant 0 : i32
    %c0_i32_0 = arith.constant 0 : i32
    return %arg0, %c0_i32 : i32, i32
  }
  func.func @transform_1(%arg0: i32, %arg1: memref<32xi32, #tpu.memory_space<smem>>) -> (i32, i32) {
    %c0_i32 = arith.constant 0 : i32
    %c0_i32_0 = arith.constant 0 : i32
    %c0_i32_1 = arith.constant 0 : i32
    return %c0_i32, %c0_i32_0 : i32, i32
  }
}

</mosaic_0001>

<llo_original>
// kernel: tpu_custom_call.1
$region0: #{tpu_custom_call.1}
  #allocation0 [shape = 'u32[]', space=smem, size = 0x4, offset = 0x4, fixed_abs, tag = 'smem constant byte address 0x4 - core index']
  #allocation1 [shape = 'u32[144,128]{1,0:T(1,128)}', space=vmem, size = 0x12000, scoped, tag = 'internal scratch']
  #allocation2 [shape = 's32[1]{0}', space=sflag, size = 0x4, scoped, tag = 'scoped memory for tpu_custom_call.1']
  #allocation3 [shape = 'u8[512]{0}', space=smem, size = 0x200, scoped, tag = 'prefetched SMEM operand 0']
  %s0 = inlined_call_operand.hbm [shape: s32[32], index: 0, kind: input, shape index: {}]
  %s1 = inlined_call_operand.hbm [shape: f32[32,128], index: 1, kind: input, shape index: {}]
  %s2 = inlined_call_operand.hbm [shape: f32[16,128], index: 2, kind: output, shape index: {}]
  %s3 = sld [smem:[#allocation0]]
  $region29: #{tpu_custom_call.1} parent=0
    _
  %s5 = ssub.s32 1, %s3
  %s6 = scalar_select 0, %s5, %s3
  %8 = dma.hbm_to_smem %s0, 16, [#allocation3], [#allocation2]
  %9 = dma.done [#allocation2], 16
  %10 = sfence
  $region1: #{tpu_custom_call.1} parent=0
    #allocation4 [shape = 'u8[16384]{0}', space=vmem, size = 0x4000, scoped, tag = 'input window, operand 1, single buffered']
    #allocation5 [shape = 's32[1]{0}', space=sflag, size = 0x4, scoped, tag = 'scoped memory for tpu_custom_call.1']
    #allocation6 [shape = 's32[1]{0}', space=sflag, size = 0x4, scoped, tag = 'scoped memory for tpu_custom_call.1']
    #allocation7 [shape = 'u8[8192]{0}', space=vmem, size = 0x2000, scoped, tag = 'output window, operand 0, single buffered']
    %11 = vsyncpa [#allocation5], 0
    %12 = vsyncpa [#allocation6], 0
    // Predicated region
    $region2: #{tpu_custom_call.1} parent=1 // pred_check
      _
    $region3: #{tpu_custom_call.1} parent=1 // pred_check_branch
      %14 = sbr.rel (0) target = $region5
    $region4: #{tpu_custom_call.1} parent=1 // pred_region
      %s16 = ssub.s32 512, 512
      %17 = vsyncadd [#allocation5], %s16
      %s18 = sshll.u32 [#allocation4], 4
      %s19 = int_to_ptr.vmem [resolvable:$true] %s18
      %24 = dma.hbm_to_vmem [thread:$0]  %s1, 512, %s19, [#allocation5], 128, 128, 8
    $region5: #{tpu_custom_call.1} parent=1 // pred_fallthru
      _
    // Predicated region
    $region6: #{tpu_custom_call.1} parent=1 // pred_check
      _
    $region7: #{tpu_custom_call.1} parent=1 // pred_check_branch
      %26 = sbr.rel (0) target = $region9
    $region8: #{tpu_custom_call.1} parent=1 // pred_region
      %27 = dma.done [#allocation5], 512
    $region9: #{tpu_custom_call.1} parent=1 // pred_fallthru
      _
    %p28 = scmp.eq.s32.totalorder 0, 0
    // Predicated region
    $region10: #{tpu_custom_call.1} parent=1 // pred_check
      %p29 = pneg %p28
    $region11: #{tpu_custom_call.1} parent=1 // pred_check_branch
      %31 = sbr.rel (%p29) target = $region13
    $region12: #{tpu_custom_call.1} parent=1 // pred_region
      %32 = vst [vmem:[#allocation7] sm:$0xff] 0.0
      %33 = vst [vmem:[#allocation7 + $0x8] sm:$0xff] 0.0
    $region13: #{tpu_custom_call.1} parent=1 // pred_fallthru
      _
    %s34 = smul.u32 0, 32
    loop: start=0, step=1, limit=32
    $region14: #{tpu_custom_call.1} parent=1 // loop_pre_header
      _
    $region15: #{tpu_custom_call.1} parent=1 // loop_header
      %s36 = sphi 0, %s40
      %p37 = scmp.ge.s32.totalorder %s36, 32
    $region16: #{tpu_custom_call.1} parent=1 // loop_header_branch
      %39 = sbr.rel (%p37) target = $region20
    $region17: #{tpu_custom_call.1} parent=1 // loop_body
      %s41 = sadd.s32 %s34, %s36
      %s42 = sld [smem:[#allocation3 + %s41]]
      %s43 = scalar_lea.vmem [#allocation7], %s42
      %v44 = vld [vmem:[%s43] sm:$0x1]
      %s45 = scalar_lea.vmem [#allocation4], %s36
      %v46 = vld [vmem:[%s45] sm:$0x1]
      %v47 = vadd.f32 %v44, %v46
      %48 = vst [vmem:[%s43] sm:$0x1] %v47
    $region18: #{tpu_custom_call.1} parent=1 // loop_footer
      %s40 = sadd.s32 1, %s36
    $region19: #{tpu_custom_call.1} parent=1 // loop_footer_branch
      %35 = sbr.rel target = $region15
    $region20: #{tpu_custom_call.1} parent=1 // loop_exit
      _
    // Predicated region
    $region21: #{tpu_custom_call.1} parent=1 // pred_check
      _
    $region22: #{tpu_custom_call.1} parent=1 // pred_check_branch
      %50 = sbr.rel (0) target = $region24
    $region23: #{tpu_custom_call.1} parent=1 // pred_region
      %s52 = ssub.s32 256, 256
      %53 = vsyncadd [#allocation6], %s52
      %s54 = sshll.u32 [#allocation7], 4
      %s55 = int_to_ptr.vmem [resolvable:$true] %s54
      %60 = dma.vmem_to_hbm [thread:$0]  %s55, 256, %s2, [#allocation6], 128, 128, 8
    $region24: #{tpu_custom_call.1} parent=1 // pred_fallthru
      _
    // Predicated region
    $region25: #{tpu_custom_call.1} parent=1 // pred_check
      _
    $region26: #{tpu_custom_call.1} parent=1 // pred_check_branch
      %62 = sbr.rel (0) target = $region28
    $region27: #{tpu_custom_call.1} parent=1 // pred_region
      %63 = dma.done [#allocation6], 256
    $region28: #{tpu_custom_call.1} parent=1 // pred_fallthru
      _
    %64 = vsyncpa [#allocation5], 1
    %65 = vsyncpa [#allocation6], 1

</llo_original>
